<compile_context>
chip_gen: v5e
topology: v5e:2x2
jax: 0.10.0
libtpu: 0.0.40
codegen_flags: <defaults>
</compile_context>

<pallas_src>
import math

import jax
import jax.numpy as jnp
from jax.experimental import pallas as pl
from jax.experimental.pallas import tpu as pltpu


def make_positional_encoding(d_model, max_len=5000, dtype=jnp.float32):
    """Deterministic sinusoidal PE table, shape (max_len, 1, d_model).

    Built once at init ("parameter setup"), so plain JAX.  Build it in the
    model's activation dtype (e.g. bfloat16) to halve its HBM traffic.
    """
    position = jnp.arange(0, max_len, dtype=jnp.float32)[:, None]            # (L, 1)
    div_term = jnp.exp(
        jnp.arange(0, d_model, 2, dtype=jnp.float32) * (-math.log(10000.0) / d_model)
    )                                                                         # (D/2,)
    pe = jnp.zeros((max_len, d_model), dtype=jnp.float32)
    pe = pe.at[:, 0::2].set(jnp.sin(position * div_term))
    pe = pe.at[:, 1::2].set(jnp.cos(position * div_term))
    return pe[:, None, :].astype(dtype)                                       # (L, 1, D)


# ----------------------------- kernels ------------------------------------- #

def _pe_add_dense_kernel(x_ref, pe_ref, o_ref):
    # x_ref/o_ref: (ts, D) — one seq tile of one batch element (sublane = seq
    # tile, lane = d_model: fully dense vregs, unmasked stores).
    # pe_ref: (ts, D) — block index is constant along the batch grid axis, so
    # it is fetched once per seq tile, not once per batch element.
    o_ref[...] = (x_ref[...] + pe_ref[...]).astype(o_ref.dtype)


def _pe_add_bcast_kernel(x_ref, pe_ref, o_ref):
    # Fallback layout. x_ref/o_ref: (ts, B, D); pe_ref: (ts, 1, D) broadcasts
    # over the batch axis. Last two block dims equal the full array dims, so
    # any (B, D) is legal.
    o_ref[...] = (x_ref[...] + pe_ref[...]).astype(o_ref.dtype)


# ----------------------------- wrapper ------------------------------------- #

def _choose_seq_tile(S, bytes_per_seq_row, vmem_budget_bytes, *, sublane_aligned):
    """Largest divisor of S whose double-buffered blocks fit the VMEM budget.

    Prefers tiles that leave >= 2 sequence steps (DMA/compute pipelining and
    2-TensorCore sharding on v7x) without shrinking a tile below 8 rows.
    """
    cap = max(1, vmem_budget_bytes // max(1, bytes_per_seq_row))
    divisors = [d for d in range(1, S + 1) if S % d == 0]
    if sublane_aligned:
        divisors = [d for d in divisors if d % 8 == 0]
    fitting = [d for d in divisors if d <= cap] or [min(divisors)]
    multi_step = [d for d in fitting if S // d >= 2 and d >= 8]
    return max(multi_step) if multi_step else max(fitting)


def positional_encoding_forward(
    x,
    pe,
    *,
    seq_tile=None,
    vmem_budget_bytes=8 * 1024 * 1024,   # conservative: fits v5e/v6e/v7x scoped VMEM
    xla_fallback_bytes=256 * 1024,       # set to 0 to force the Pallas path
):
    """x: (S, B, D); pe: (max_len, 1, D). Returns x + pe[:S] in x.dtype."""
    S, B, D = x.shape
    max_len = pe.shape[0]
    assert pe.shape == (max_len, 1, D), (pe.shape, x.shape)
    assert S <= max_len, f"sequence length {S} exceeds pe max_len {max_len}"

    x_item = jnp.dtype(x.dtype).itemsize
    pe_item = jnp.dtype(pe.dtype).itemsize

    # Tiny inputs: pallas_call fixed overhead dwarfs the work; let XLA fuse it.
    if x.size * x_item < xla_fallback_bytes:
        return (x + pe[:S]).astype(x.dtype)

    # Dense fast path: lane axis = d_model (multiple of 128), sublane axis = seq tile.
    use_dense = (S % 8 == 0) and (B == 1 or D % 128 == 0)

    if use_dense:
        # x + out (double-buffered, x.dtype) + pe (double-buffered, pe.dtype) per seq row.
        bytes_per_row = 2 * (2 * D * x_item + D * pe_item)
        ts = seq_tile or _choose_seq_tile(
            S, bytes_per_row, vmem_budget_bytes, sublane_aligned=True)
        assert S % ts == 0 and ts % 8 == 0, ts

        x2 = x.reshape(S, B * D)            # free view (row-major)
        pe2 = pe.reshape(max_len, D)        # free view; only rows < S are read
        out2 = pl.pallas_call(
            _pe_add_dense_kernel,
            out_shape=jax.ShapeDtypeStruct((S, B * D), x.dtype),
            grid_spec=pltpu.PrefetchScalarGridSpec(
                num_scalar_prefetch=0,
                grid=(S // ts, B),
                in_specs=[
                    pl.BlockSpec((ts, D), lambda i, b: (i, b)),   # x[i-th seq tile, batch b]
                    pl.BlockSpec((ts, D), lambda i, b: (i, 0)),   # pe[i-th seq tile]
                ],
                out_specs=pl.BlockSpec((ts, D), lambda i, b: (i, b)),
            ),
            compiler_params=pltpu.CompilerParams(
                dimension_semantics=("parallel", "parallel"),
            ),
        )(x2, pe2)
        return out2.reshape(S, B, D)

    # Fallback layout (d_model not a multiple of 128 with batch > 1, or ragged S):
    # full (ts, B, D) blocks; pe stays (max_len, 1, D) and broadcasts over batch.
    # TODO(synk): for bf16 + very small batch this leaves sublanes idle; a
    # sublane-expanding broadcast (flattened (S*B, D) rows) would fix it.
    bytes_per_row = 2 * (2 * B * D * x_item + D * pe_item)
    ts = seq_tile or _choose_seq_tile(
        S, bytes_per_row, vmem_budget_bytes, sublane_aligned=False)
    assert S % ts == 0, ts

    return pl.pallas_call(
        _pe_add_bcast_kernel,
        out_shape=jax.ShapeDtypeStruct((S, B, D), x.dtype),
        grid_spec=pltpu.PrefetchScalarGridSpec(
            num_scalar_prefetch=0,
            grid=(S // ts,),
            in_specs=[
                pl.BlockSpec((ts, B, D), lambda i: (i, 0, 0)),
                pl.BlockSpec((ts, 1, D), lambda i: (i, 0, 0)),   # only first S/ts blocks touched
            ],
            out_specs=pl.BlockSpec((ts, B, D), lambda i: (i, 0, 0)),
        ),
        compiler_params=pltpu.CompilerParams(
            dimension_semantics=("parallel",),
        ),
    )(x, pe)


# ------------------------------- demo -------------------------------------- #

if __name__ == "__main__":
    key = jax.random.PRNGKey(0)

    # Case 1: lane/sublane-dense fast path (d_model multiple of 128), float32.
    S1, B1, D1 = 128, 2, 128
    pe1 = make_positional_encoding(D1, max_len=256)
    x1 = jax.random.normal(key, (S1, B1, D1), dtype=jnp.float32)
    out1 = jax.block_until_ready(
        positional_encoding_forward(x1, pe1, xla_fallback_bytes=0))
    ref1 = x1 + pe1[:S1]
    assert out1.shape == x1.shape and out1.dtype == x1.dtype
    assert jnp.allclose(out1, ref1, atol=1e-6, rtol=1e-6)

    # Case 2: small-model fallback path (d_model=32 not lane-aligned) — the
    # original module-sized demo shapes.
    S2, B2, D2 = 8, 2, 32
    pe2 = make_positional_encoding(D2, max_len=64)
    x2 = jax.random.normal(jax.random.fold_in(key, 1), (S2, B2, D2), dtype=jnp.float32)
    out2 = jax.block_until_ready(
        positional_encoding_forward(x2, pe2, xla_fallback_bytes=0))
    ref2 = x2 + pe2[:S2]
    assert out2.shape == x2.shape and out2.dtype == x2.dtype
    assert jnp.allclose(out2, ref2, atol=1e-6, rtol=1e-6)

    # Case 3: bf16 activations with pe built in the matching dtype (fast path).
    x3 = x1.astype(jnp.bfloat16)
    pe3 = make_positional_encoding(D1, max_len=256, dtype=jnp.bfloat16)
    out3 = jax.block_until_ready(
        positional_encoding_forward(x3, pe3, xla_fallback_bytes=0))
    ref3 = x3 + pe3[:S1]
    assert out3.dtype == jnp.bfloat16
    assert jnp.allclose(out3.astype(jnp.float32), ref3.astype(jnp.float32),
                        atol=2e-2, rtol=2e-2)

    print("KERNEL_OK")
</pallas_src>

<mosaic_0001>
module attributes {stable_mosaic.version = 11 : i64} {
  func.func @_pe_add_dense_kernel(%arg0: i32, %arg1: i32, %arg2: memref<64x128xf32, #tpu.memory_space<vmem>>, %arg3: memref<64x128xf32, #tpu.memory_space<vmem>>, %arg4: memref<64x128xf32, #tpu.memory_space<vmem>>) attributes {dimension_semantics = [#tpu.dimension_semantics<parallel>, #tpu.dimension_semantics<parallel>], iteration_bounds = array<i64: 2, 2>, scalar_prefetch = 0 : i64, scratch_operands = 0 : i64, tpu.core_type = #tpu.core_type<tc>, window_params = [{transform_indices = @transform_0, window_bounds = array<i64: 64, 128>}, {transform_indices = @transform_1, window_bounds = array<i64: 64, 128>}, {transform_indices = @transform_2, window_bounds = array<i64: 64, 128>}]} {
    %c0 = arith.constant 0 : index
    %c0_0 = arith.constant 0 : index
    %0 = vector.load %arg2[%c0, %c0_0] : memref<64x128xf32, #tpu.memory_space<vmem>>, vector<64x128xf32>
    %c0_1 = arith.constant 0 : index
    %c0_2 = arith.constant 0 : index
    %1 = vector.load %arg3[%c0_1, %c0_2] : memref<64x128xf32, #tpu.memory_space<vmem>>, vector<64x128xf32>
    %2 = arith.addf %0, %1 : vector<64x128xf32>
    %c0_3 = arith.constant 0 : index
    %c0_4 = arith.constant 0 : index
    %3 = vector.load %arg4[%c0_3, %c0_4] : memref<64x128xf32, #tpu.memory_space<vmem>>, vector<64x128xf32>
    tpu.vector_store %arg4[%c0_3, %c0_4], %2 {strides = array<i32>} : memref<64x128xf32, #tpu.memory_space<vmem>>, vector<64x128xf32>,
    return
  }
  func.func @transform_0(%arg0: i32, %arg1: i32) -> (i32, i32) {
    %c0_i32 = arith.constant 0 : i32
    return %arg0, %arg1 : i32, i32
  }
  func.func @transform_1(%arg0: i32, %arg1: i32) -> (i32, i32) {
    %c0_i32 = arith.constant 0 : i32
    %c0_i32_0 = arith.constant 0 : i32
    return %arg0, %c0_i32 : i32, i32
  }
  func.func @transform_2(%arg0: i32, %arg1: i32) -> (i32, i32) {
    %c0_i32 = arith.constant 0 : i32
    return %arg0, %arg1 : i32, i32
  }
}

</mosaic_0001>

<llo_original>
// kernel: tpu_custom_call.1
$region0: #{tpu_custom_call.1}
  #allocation0 [shape = 'u32[]', space=smem, size = 0x4, offset = 0x4, fixed_abs, tag = 'smem constant byte address 0x4 - core index']
  #allocation1 [shape = 'u32[72,128]{1,0:T(1,128)}', space=vmem, size = 0x9000, scoped, tag = 'internal scratch']
  %s0 = inlined_call_operand.hbm [shape: f32[128,256], index: 0, kind: input, shape index: {}]
  %s1 = inlined_call_operand.hbm [shape: f32[256,128], index: 1, kind: input, shape index: {}]
  %s2 = inlined_call_operand.hbm [shape: f32[128,256], index: 2, kind: output, shape index: {}]
  %s3 = sld [smem:[#allocation0]]
  $region49: #{tpu_custom_call.1} parent=0
    _
  %s5 = ssub.s32 1, %s3
  %s6 = scalar_select 0, %s5, %s3
  $region1: #{tpu_custom_call.1} parent=0
    #allocation2 [shape = 'u8[65536]{0}', space=vmem, size = 0x10000, scoped, tag = 'input window, operand 0']
    #allocation3 [shape = 's32[2]{0}', space=sflag, size = 0x8, scoped, tag = 'scoped memory for tpu_custom_call.1']
    #allocation4 [shape = 's32[2]{0}', space=sflag, size = 0x8, scoped, tag = 'scoped memory for tpu_custom_call.1']
    #allocation5 [shape = 'u8[65536]{0}', space=vmem, size = 0x10000, scoped, tag = 'input window, operand 1']
    #allocation6 [shape = 's32[2]{0}', space=sflag, size = 0x8, scoped, tag = 'scoped memory for tpu_custom_call.1']
    #allocation7 [shape = 'u8[65536]{0}', space=vmem, size = 0x10000, scoped, tag = 'output window, operand 0']
    %7 = vsyncpa [#allocation3], 0
    %s8 = scalar_lea.sflag [#allocation3], 1
    %9 = vsyncpa %s8, 0
    %10 = vsyncpa [#allocation6], 0
    %s11 = scalar_lea.sflag [#allocation6], 1
    %12 = vsyncpa %s11, 0
    %13 = vsyncpa [#allocation4], 0
    %s14 = scalar_lea.sflag [#allocation4], 1
    %15 = vsyncpa %s14, 0
    loop: start=0, step=1, limit=6
    $region2: #{tpu_custom_call.1} parent=1 // loop_pre_header
      _
    $region3: #{tpu_custom_call.1} parent=1 // loop_header
      %s17 = sphi 0, %s21
      %p18 = scmp.ge.s32.totalorder %s17, 6
      %s24 = sphi 0, %s36
      %s25 = sphi 0, %s32
      %s26 = sphi 0, %s24
      %s27 = sphi 0, %s25
      %s28 = sphi 0, %s26
      %s29 = sphi 0, %s27
      %s41 = sphi 0, %s43
      %s44 = sphi 0, %s41
      %s45 = sphi 0, %s44
      %s61 = sphi 0, %s45
      %s67 = sphi 0, %s69
      %s70 = sphi 0, %s67
      %s71 = sphi 0, %s70
      %s87 = sphi 0, %s71
      %s95 = sphi 0, %s97
      %s98 = sphi 0, %s95
      %s99 = sphi 0, %s98
      %s115 = sphi 0, %s99
    $region4: #{tpu_custom_call.1} parent=1 // loop_header_branch
      %20 = sbr.rel (%p18) target = $region8
    $region5: #{tpu_custom_call.1} parent=1 // loop_body
      %s22 = ssub.s32 %s17, 1
      %s23 = ssub.s32 %s17, 2
      %s30 = sadd.s32 1, %s25
      %p31 = scmp.ge.s32.totalorder %s30, 2
      %s32 = scalar_select %p31, 0, %s30
      %s33 = sadd.s32 1, %s24
      %s34 = scalar_select %p31, %s33, %s24
      %p35 = scmp.ge.s32.totalorder %s34, 2
      %s36 = scalar_select %p35, 0, %s34
      %s37 = ssub.s32 %s24, %s36
      %s38 = ssub.s32 %s25, %s32
      %s39 = sor.u32 %s37, %s38
      %p40 = scmp.eq.s32.totalorder %s39, 0
      %s42 = sadd.s32 %s41, 1
      %s43 = scalar_select %p40, %s41, %s42
      %p46 = pneg %p40
      %p47 = scmp.eq.s32.totalorder %s17, 3
      %p48 = por %p46, %p47
      %p49 = scmp.ne.s32.totalorder %s41, %s44
      %p50 = scmp.eq.s32.totalorder %s17, 0
      %p51 = por %p49, %p50
      %p52 = scmp.ne.s32.totalorder %s41, %s44
      %p53 = scmp.eq.s32.totalorder %s22, 3
      %p54 = por %p52, %p53
      %p55 = scmp.ne.s32.totalorder %s44, %s45
      %p56 = scmp.eq.s32.totalorder %s22, 0
      %p57 = por %p55, %p56
      %p58 = scmp.ne.s32.totalorder %s44, %s45
      %p59 = scmp.eq.s32.totalorder %s23, 3
      %p60 = por %p58, %p59
      %p62 = scmp.ne.s32.totalorder %s45, %s61
      %p63 = scmp.eq.s32.totalorder %s23, 0
      %p64 = por %p62, %p63
      %s65 = ssub.s32 %s24, %s36
      %p66 = scmp.eq.s32.totalorder %s65, 0
      %s68 = sadd.s32 %s67, 1
      %s69 = scalar_select %p66, %s67, %s68
      %p72 = pneg %p66
      %p73 = scmp.eq.s32.totalorder %s17, 3
      %p74 = por %p72, %p73
      %p75 = scmp.ne.s32.totalorder %s67, %s70
      %p76 = scmp.eq.s32.totalorder %s17, 0
      %p77 = por %p75, %p76
      %p78 = scmp.ne.s32.totalorder %s67, %s70
      %p79 = scmp.eq.s32.totalorder %s22, 3
      %p80 = por %p78, %p79
      %p81 = scmp.ne.s32.totalorder %s70, %s71
      %p82 = scmp.eq.s32.totalorder %s22, 0
      %p83 = por %p81, %p82
      %p84 = scmp.ne.s32.totalorder %s70, %s71
      %p85 = scmp.eq.s32.totalorder %s23, 3
      %p86 = por %p84, %p85
      %p88 = scmp.ne.s32.totalorder %s71, %s87
      %p89 = scmp.eq.s32.totalorder %s23, 0
      %p90 = por %p88, %p89
      %s91 = ssub.s32 %s24, %s36
      %s92 = ssub.s32 %s25, %s32
      %s93 = sor.u32 %s91, %s92
      %p94 = scmp.eq.s32.totalorder %s93, 0
      %s96 = sadd.s32 %s95, 1
      %s97 = scalar_select %p94, %s95, %s96
      %p100 = pneg %p94
      %p101 = scmp.eq.s32.totalorder %s17, 3
      %p102 = por %p100, %p101
      %p103 = scmp.ne.s32.totalorder %s95, %s98
      %p104 = scmp.eq.s32.totalorder %s17, 0
      %p105 = por %p103, %p104
      %p106 = scmp.ne.s32.totalorder %s95, %s98
      %p107 = scmp.eq.s32.totalorder %s22, 3
      %p108 = por %p106, %p107
      %p109 = scmp.ne.s32.totalorder %s98, %s99
      %p110 = scmp.eq.s32.totalorder %s22, 0
      %p111 = por %p109, %p110
      %p112 = scmp.ne.s32.totalorder %s98, %s99
      %p113 = scmp.eq.s32.totalorder %s23, 3
      %p114 = por %p112, %p113
      %p116 = scmp.ne.s32.totalorder %s99, %s115
      %p117 = scmp.eq.s32.totalorder %s23, 0
      %p118 = por %p116, %p117
      %p119 = scmp.le.s32.totalorder 1, %s17
      %p120 = scmp.lt.s32.totalorder %s17, 5
      %p121 = pnand %p119, %p120
      %p122 = pneg %p121
      // Predicated region
      $region9: #{tpu_custom_call.1} parent=5 // pred_check
        _
      $region10: #{tpu_custom_call.1} parent=5 // pred_check_branch
        %124 = sbr.rel (%p121) target = $region12
      $region11: #{tpu_custom_call.1} parent=5 // pred_region
        %s125 = ssub.s32 %s17, 1
      $region12: #{tpu_custom_call.1} parent=5 // pred_fallthru
        _
      %p126 = scmp.lt.s32.totalorder %s17, 4
      // Predicated region
      $region13: #{tpu_custom_call.1} parent=5 // pred_check
        %p127 = pneg %p126
      $region14: #{tpu_custom_call.1} parent=5 // pred_check_branch
        %129 = sbr.rel (%p127) target = $region16
      $region15: #{tpu_custom_call.1} parent=5 // pred_region
        // Predicated region
        $region17: #{tpu_custom_call.1} parent=15 // pred_check
          %p130 = pneg %p51
        $region18: #{tpu_custom_call.1} parent=15 // pred_check_branch
          %132 = sbr.rel (%p130) target = $region20
        $region19: #{tpu_custom_call.1} parent=15 // pred_region
          %s133 = sand.u32 %s41, 1
          %s134 = scalar_lea.sflag [#allocation3], %s133
          %s135 = sand.u32 %s41, 1
          %s136 = smul.addr %s135, 64
          %s137 = scalar_lea.vmem [#allocation2], %s136
          %s138 = smul.u32 8, %s24
          %140 = vsyncadd %s134, 0
          %s141 = smul.addr %s138, 2
          %s142 = sadd.s32 %s25, %s141
          %s143 = smul.addr %s142, 8
          %s144 = scalar_lea.hbm %s0, %s143
          %s145 = sshll.u32 %s144, 4
          %s146 = int_to_ptr.hbm [resolvable:$true] %s145
          %s147 = sshll.u32 %s137, 4
          %s148 = int_to_ptr.vmem [resolvable:$true] %s147
          %153 = dma.hbm_to_vmem [thread:$0]  %s146, 1024, %s148, %s134, 256, 128, 8
        $region20: #{tpu_custom_call.1} parent=15 // pred_fallthru
          _
        // Predicated region
        $region21: #{tpu_custom_call.1} parent=15 // pred_check
          %p154 = pneg %p77
        $region22: #{tpu_custom_call.1} parent=15 // pred_check_branch
          %156 = sbr.rel (%p154) target = $region24
        $region23: #{tpu_custom_call.1} parent=15 // pred_region
          %s157 = sand.u32 %s67, 1
          %s158 = scalar_lea.sflag [#allocation6], %s157
          %s159 = sand.u32 %s67, 1
          %s160 = smul.addr %s159, 64
          %s161 = scalar_lea.vmem [#allocation5], %s160
          %s162 = smul.u32 8, %s24
          %164 = vsyncadd %s158, 0
          %s165 = smul.addr %s162, 8
          %s166 = scalar_lea.hbm %s1, %s165
          %s167 = sshll.u32 %s166, 4
          %s168 = int_to_ptr.hbm [resolvable:$true] %s167
          %s169 = sshll.u32 %s161, 4
          %s170 = int_to_ptr.vmem [resolvable:$true] %s169
          %175 = dma.hbm_to_vmem [thread:$0]  %s168, 1024, %s170, %s158, 128, 128, 8
        $region24: #{tpu_custom_call.1} parent=15 // pred_fallthru
          _
      $region16: #{tpu_custom_call.1} parent=5 // pred_fallthru
        _
      %p176 = scmp.le.s32.totalorder 1, %s17
      %p177 = scmp.lt.s32.totalorder %s17, 5
      %p178 = pnand %p176, %p177
      %p179 = pneg %p178
      // Predicated region
      $region25: #{tpu_custom_call.1} parent=5 // pred_check
        _
      $region26: #{tpu_custom_call.1} parent=5 // pred_check_branch
        %181 = sbr.rel (%p178) target = $region28
      $region27: #{tpu_custom_call.1} parent=5 // pred_region
        %s182 = ssub.s32 %s17, 1
        %s183 = sand.u32 %s44, 1
        %s184 = scalar_lea.sflag [#allocation3], %s183
        %s185 = sand.u32 %s44, 1
        %s186 = smul.addr %s185, 64
        %s187 = scalar_lea.vmem [#allocation2], %s186
        // Predicated region
        $region29: #{tpu_custom_call.1} parent=27 // pred_check
          %p188 = pneg %p57
        $region30: #{tpu_custom_call.1} parent=27 // pred_check_branch
          %190 = sbr.rel (%p188) target = $region32
        $region31: #{tpu_custom_call.1} parent=27 // pred_region
          %192 = dma.done %s184, 1024
        $region32: #{tpu_custom_call.1} parent=27 // pred_fallthru
          _
        %s193 = sand.u32 %s70, 1
        %s194 = scalar_lea.sflag [#allocation6], %s193
        %s195 = sand.u32 %s70, 1
        %s196 = smul.addr %s195, 64
        %s197 = scalar_lea.vmem [#allocation5], %s196
        // Predicated region
        $region33: #{tpu_custom_call.1} parent=27 // pred_check
          %p198 = pneg %p83
        $region34: #{tpu_custom_call.1} parent=27 // pred_check_branch
          %200 = sbr.rel (%p198) target = $region36
        $region35: #{tpu_custom_call.1} parent=27 // pred_region
          %202 = dma.done %s194, 1024
        $region36: #{tpu_custom_call.1} parent=27 // pred_fallthru
          _
        %s203 = sand.u32 %s44, 1
        %s204 = scalar_lea.sflag [#allocation3], %s203
        %s205 = sand.u32 %s44, 1
        %s206 = smul.addr %s205, 64
        %s207 = scalar_lea.vmem [#allocation2], %s206
        %p208 = pneg %p57
        %p209 = pneg %p54
        %s210 = sand.u32 %s70, 1
        %s211 = scalar_lea.sflag [#allocation6], %s210
        %s212 = sand.u32 %s70, 1
        %s213 = smul.addr %s212, 64
        %s214 = scalar_lea.vmem [#allocation5], %s213
        %p215 = pneg %p83
        %p216 = pneg %p80
        %p217 = pneg %p111
        %p218 = pneg %p108
        %s219 = sand.u32 %s98, 1
        %s220 = scalar_lea.sflag [#allocation4], %s219
        %s221 = sand.u32 %s98, 1
        %s222 = smul.addr %s221, 64
        %s223 = scalar_lea.vmem [#allocation7], %s222
        %s224 = smul.u32 8, %s26
        %s225 = smul.u32 8, %s26
        %s226 = smul.u32 8, %s26
        %v227 = vld [vmem:[%s187] sm:$0xff]
        %v228 = vld [vmem:[%s187 + $0x8] sm:$0xff]
        %v229 = vld [vmem:[%s187 + $0x10] sm:$0xff]
        %v230 = vld [vmem:[%s187 + $0x18] sm:$0xff]
        %v231 = vld [vmem:[%s187 + $0x20] sm:$0xff]
        %v232 = vld [vmem:[%s187 + $0x28] sm:$0xff]
        %v233 = vld [vmem:[%s187 + $0x30] sm:$0xff]
        %v234 = vld [vmem:[%s187 + $0x38] sm:$0xff]
        %v235 = vld [vmem:[%s197] sm:$0xff]
        %v236 = vld [vmem:[%s197 + $0x8] sm:$0xff]
        %v237 = vld [vmem:[%s197 + $0x10] sm:$0xff]
        %v238 = vld [vmem:[%s197 + $0x18] sm:$0xff]
        %v239 = vld [vmem:[%s197 + $0x20] sm:$0xff]
        %v240 = vld [vmem:[%s197 + $0x28] sm:$0xff]
        %v241 = vld [vmem:[%s197 + $0x30] sm:$0xff]
        %v242 = vld [vmem:[%s197 + $0x38] sm:$0xff]
        %v243 = vadd.f32 %v227, %v235
        %v244 = vadd.f32 %v228, %v236
        %v245 = vadd.f32 %v229, %v237
        %v246 = vadd.f32 %v230, %v238
        %v247 = vadd.f32 %v231, %v239
        %v248 = vadd.f32 %v232, %v240
        %v249 = vadd.f32 %v233, %v241
        %v250 = vadd.f32 %v234, %v242
        %251 = vst [vmem:[%s223] sm:$0xff] %v243
        %252 = vst [vmem:[%s223 + $0x8] sm:$0xff] %v244
        %253 = vst [vmem:[%s223 + $0x10] sm:$0xff] %v245
        %254 = vst [vmem:[%s223 + $0x18] sm:$0xff] %v246
        %255 = vst [vmem:[%s223 + $0x20] sm:$0xff] %v247
        %256 = vst [vmem:[%s223 + $0x28] sm:$0xff] %v248
        %257 = vst [vmem:[%s223 + $0x30] sm:$0xff] %v249
        %258 = vst [vmem:[%s223 + $0x38] sm:$0xff] %v250
        %s259 = sand.u32 %s98, 1
        %s260 = scalar_lea.sflag [#allocation4], %s259
        %s261 = sand.u32 %s98, 1
        %s262 = smul.addr %s261, 64
        %s263 = scalar_lea.vmem [#allocation7], %s262
        // Predicated region
        $region37: #{tpu_custom_call.1} parent=27 // pred_check
          %p264 = pneg %p108
        $region38: #{tpu_custom_call.1} parent=27 // pred_check_branch
          %266 = sbr.rel (%p264) target = $region40
        $region39: #{tpu_custom_call.1} parent=27 // pred_region
          %s267 = smul.u32 8, %s26
          %269 = vsyncadd %s260, 0
          %s270 = smul.addr %s267, 2
          %s271 = sadd.s32 %s27, %s270
          %s272 = smul.addr %s271, 8
          %s273 = scalar_lea.hbm %s2, %s272
          %s274 = sshll.u32 %s263, 4
          %s275 = int_to_ptr.vmem [resolvable:$true] %s274
          %s276 = sshll.u32 %s273, 4
          %s277 = int_to_ptr.hbm [resolvable:$true] %s276
          %282 = dma.vmem_to_hbm [thread:$0]  %s275, 1024, %s277, %s260, 128, 256, 8
        $region40: #{tpu_custom_call.1} parent=27 // pred_fallthru
          _
      $region28: #{tpu_custom_call.1} parent=5 // pred_fallthru
        _
      %p283 = scmp.le.s32.totalorder 2, %s17
      // Predicated region
      $region41: #{tpu_custom_call.1} parent=5 // pred_check
        %p284 = pneg %p283
      $region42: #{tpu_custom_call.1} parent=5 // pred_check_branch
        %286 = sbr.rel (%p284) target = $region44
      $region43: #{tpu_custom_call.1} parent=5 // pred_region
        %s287 = ssub.s32 %s17, 2
        // Predicated region
        $region45: #{tpu_custom_call.1} parent=43 // pred_check
          %p288 = pneg %p114
        $region46: #{tpu_custom_call.1} parent=43 // pred_check_branch
          %290 = sbr.rel (%p288) target = $region48
        $region47: #{tpu_custom_call.1} parent=43 // pred_region
          %s291 = sand.u32 %s99, 1
          %s292 = scalar_lea.sflag [#allocation4], %s291
          %s293 = sand.u32 %s99, 1
          %s294 = smul.addr %s293, 64
          %s295 = scalar_lea.vmem [#allocation7], %s294
          %297 = dma.done %s292, 1024
        $region48: #{tpu_custom_call.1} parent=43 // pred_fallthru
          _
      $region44: #{tpu_custom_call.1} parent=5 // pred_fallthru
        _
    $region6: #{tpu_custom_call.1} parent=1 // loop_footer
      %s21 = sadd.s32 1, %s17
    $region7: #{tpu_custom_call.1} parent=1 // loop_footer_branch
      %16 = sbr.rel target = $region3
    $region8: #{tpu_custom_call.1} parent=1 // loop_exit
      _
    %298 = vsyncpa [#allocation3], 1
    %s299 = scalar_lea.sflag [#allocation3], 1
    %300 = vsyncpa %s299, 1
    %301 = vsyncpa [#allocation6], 1
    %s302 = scalar_lea.sflag [#allocation6], 1
    %303 = vsyncpa %s302, 1
    %304 = vsyncpa [#allocation4], 1
    %s305 = scalar_lea.sflag [#allocation4], 1
    %306 = vsyncpa %s305, 1

</llo_original>
